<compile_context>
chip_gen: v7x
topology: tpu7x:2x2x1
jax: 0.10.0
libtpu: 0.0.40
codegen_flags: <defaults>
</compile_context>

<pallas_src>
import functools
import math

import jax
import jax.numpy as jnp
from jax import lax
from jax.experimental import pallas as pl
from jax.experimental.pallas import tpu as pltpu

_EPS = 1e-8
_LANE = 128
_SUBLANE = 8
# Per-input tile budget in f32 elements (4 MiB).  4 plane inputs x 2 pipeline
# buffers x 4 MiB = 32 MiB of streamed VMEM.
_TILE_BUDGET_ELEMS = 1024 * 1024
_VMEM_LIMIT_BYTES = 48 * 1024 * 1024


def _round_up(x: int, m: int) -> int:
    return (x + m - 1) // m * m


def _round_down(x: int, m: int) -> int:
    return x // m * m


def _snr_kernel(xr_ref, xi_ref, yr_ref, yi_ref, out_ref,
                dr_acc, di_acc, ar_acc, ai_acc, *, eps, tail):
    # xr/xi/yr/yi: (Nb, Lt) f32 tiles of input.real / input.imag /
    # target.real / target.imag.  out_ref: (Nb, 1) per-element loss.
    # Accumulators: (Nb, 1) f32 VMEM scratch, persistent across the t axis.
    t = pl.program_id(1)
    nt = pl.num_programs(1)

    @pl.when(t == 0)
    def _init():
        dr_acc[...] = jnp.zeros_like(dr_acc)
        di_acc[...] = jnp.zeros_like(di_acc)
        ar_acc[...] = jnp.zeros_like(ar_acc)
        ai_acc[...] = jnp.zeros_like(ai_acc)

    xr = xr_ref[...]
    xi = xi_ref[...]
    yr = yr_ref[...]
    yi = yi_ref[...]

    def accumulate(mask):
        d_re = jnp.abs(xr - yr)
        d_im = jnp.abs(xi - yi)
        a_re = jnp.abs(yr)
        a_im = jnp.abs(yi)
        if mask is not None:
            zero = jnp.zeros((), jnp.float32)
            d_re = jnp.where(mask, d_re, zero)
            d_im = jnp.where(mask, d_im, zero)
            a_re = jnp.where(mask, a_re, zero)
            a_im = jnp.where(mask, a_im, zero)
        dr_acc[...] += jnp.sum(d_re, axis=-1, keepdims=True)
        di_acc[...] += jnp.sum(d_im, axis=-1, keepdims=True)
        ar_acc[...] += jnp.sum(a_re, axis=-1, keepdims=True)
        ai_acc[...] += jnp.sum(a_im, axis=-1, keepdims=True)

    if tail == 0:
        # Reduction length divides the tile width: no masking anywhere.
        accumulate(None)
    else:
        # Only the last reduction tile carries an out-of-bounds lane tail
        # (unspecified VMEM contents) -> mask it there, full-speed elsewhere.
        @pl.when(t < nt - 1)
        def _full():
            accumulate(None)

        @pl.when(t == nt - 1)
        def _masked():
            lane = lax.broadcasted_iota(jnp.int32, xr.shape, 1)
            accumulate(lane < tail)

    @pl.when(t == nt - 1)
    def _finalize():
        loss_re = 10.0 * (jnp.log10(dr_acc[...] + eps) - jnp.log10(ar_acc[...] + eps))
        loss_im = 10.0 * (jnp.log10(di_acc[...] + eps) - jnp.log10(ai_acc[...] + eps))
        out_ref[...] = (loss_re + loss_im).astype(out_ref.dtype)


@functools.partial(jax.jit, static_argnames=("reduction", "eps", "tile_budget_elems"))
def spectrogram_l1_snr(inp, tgt, reduction: str = "mean", eps: float = _EPS,
                       tile_budget_elems: int = _TILE_BUDGET_ELEMS):
    """Pallas implementation of SpectrogramL1SNR.forward.

    inp, tgt: complex arrays of shape (..., F, T).
    """
    assert inp.shape == tgt.shape, (inp.shape, tgt.shape)
    if reduction not in ("mean", "sum", "none"):
        raise ValueError(f"Invalid reduction {reduction} is found.")

    *lead, F, T = inp.shape
    n = int(math.prod(lead))
    L = F * T

    # Split complex inputs into 4 lane-dense f32 planes (Mosaic has no complex
    # dtype support).  This is the only prep traffic left; no host-side pad.
    # TODO(synk): if the spectrogram producer can hand over split real/imag
    # f32 planes directly, these extraction copies disappear entirely.
    def plane(z, part):
        p = jnp.real(z) if part == "re" else jnp.imag(z)
        return p.astype(jnp.float32).reshape(n, L)

    xr, xi = plane(inp, "re"), plane(inp, "im")
    yr, yi = plane(tgt, "re"), plane(tgt, "im")

    # ---------------- tiling ----------------
    budget = max(int(tile_budget_elems), _SUBLANE * _LANE)
    L_lanes = _round_up(L, _LANE)
    max_lanes = max(_LANE, _round_down(budget // _SUBLANE, _LANE))
    Lt = min(L_lanes, max_lanes)                 # lane-dense reduction tile
    nt = pl.cdiv(L, Lt)
    tail = L - (nt - 1) * Lt                     # valid lanes in the last tile
    if tail == Lt:
        tail = 0

    n_pad8 = _round_up(n, _SUBLANE)
    Nb = max(_SUBLANE, _round_down(budget // Lt, _SUBLANE))
    # Keep >=2 row blocks when possible so megacore (v7x) can shard the
    # parallel row axis across both TensorCores.
    if n_pad8 >= 2 * _SUBLANE:
        Nb = min(Nb, max(_SUBLANE, _round_down(n_pad8 // 2, _SUBLANE)))
    Nb = min(Nb, n_pad8)

    grid = (pl.cdiv(n, Nb), nt)
    in_spec = pl.BlockSpec((Nb, Lt), lambda i, t: (i, t))

    per_elem = pl.pallas_call(
        functools.partial(_snr_kernel, eps=eps, tail=tail),
        out_shape=jax.ShapeDtypeStruct((n, 1), jnp.float32),
        grid=grid,
        in_specs=[in_spec, in_spec, in_spec, in_spec],
        out_specs=pl.BlockSpec((Nb, 1), lambda i, t: (i, 0)),
        scratch_shapes=[pltpu.VMEM((Nb, 1), jnp.float32)] * 4,
        compiler_params=pltpu.CompilerParams(
            dimension_semantics=("parallel", "arbitrary"),
            vmem_limit_bytes=_VMEM_LIMIT_BYTES,
        ),
    )(xr, xi, yr, yi)

    loss = per_elem[:, 0]
    loss = loss.reshape(tuple(lead)) if lead else loss.reshape(())

    if reduction == "mean":
        return jnp.mean(loss)
    if reduction == "sum":
        return jnp.sum(loss)
    return loss


def _reference(inp, tgt, reduction="mean", eps=_EPS):
    lr = jnp.sum(jnp.abs(jnp.real(inp) - jnp.real(tgt)), axis=(-2, -1))
    li = jnp.sum(jnp.abs(jnp.imag(inp) - jnp.imag(tgt)), axis=(-2, -1))
    tr = jnp.sum(jnp.abs(jnp.real(tgt)), axis=(-2, -1))
    ti = jnp.sum(jnp.abs(jnp.imag(tgt)), axis=(-2, -1))
    lr = 10.0 * (jnp.log10(lr + eps) - jnp.log10(tr + eps))
    li = 10.0 * (jnp.log10(li + eps) - jnp.log10(ti + eps))
    out = lr + li
    if reduction == "mean":
        return jnp.mean(out)
    if reduction == "sum":
        return jnp.sum(out)
    return out


def _make(key, shape):
    k1, k2 = jax.random.split(key)
    return (jax.random.normal(k1, shape, jnp.float32)
            + 1j * jax.random.normal(k2, shape, jnp.float32)).astype(jnp.complex64)


if __name__ == "__main__":
    root = jax.random.PRNGKey(0)
    k1, k2, k3, k4, k5, k6 = jax.random.split(root, 6)

    # Case 1: (B, C, F, T) = (2, 4, 16, 16), mean reduction (no lane tail).
    B, C, F, T = 2, 4, 16, 16
    inp = _make(k1, (B, C, F, T))
    tgt = _make(k2, (B, C, F, T))
    loss = jax.block_until_ready(spectrogram_l1_snr(inp, tgt, reduction="mean"))
    ref = _reference(inp, tgt, reduction="mean")
    assert jnp.allclose(loss, ref, rtol=1e-5, atol=1e-5), (loss, ref)

    # Case 2: odd shapes (lane tail + partial row block), "none" reduction.
    B2, C2, F2, T2 = 3, 5, 17, 9
    inp2 = _make(k3, (B2, C2, F2, T2))
    tgt2 = _make(k4, (B2, C2, F2, T2))
    loss2 = jax.block_until_ready(spectrogram_l1_snr(inp2, tgt2, reduction="none"))
    ref2 = _reference(inp2, tgt2, reduction="none")
    assert loss2.shape == (B2, C2), loss2.shape
    assert jnp.allclose(loss2, ref2, rtol=1e-5, atol=1e-5), (loss2, ref2)

    # Case 3: tiny tile budget -> multiple reduction tiles + tail, "sum".
    B3, C3, F3, T3 = 2, 2, 16, 33
    inp3 = _make(k5, (B3, C3, F3, T3))
    tgt3 = _make(k6, (B3, C3, F3, T3))
    loss3 = jax.block_until_ready(
        spectrogram_l1_snr(inp3, tgt3, reduction="sum", tile_budget_elems=2048))
    ref3 = _reference(inp3, tgt3, reduction="sum")
    assert jnp.allclose(loss3, ref3, rtol=1e-5, atol=1e-5), (loss3, ref3)

    print("KERNEL_OK")
</pallas_src>

<mosaic_0001>
module attributes {stable_mosaic.version = 11 : i64} {
  func.func @_snr_kernel(%arg0: i32, %arg1: i32, %arg2: memref<8x256xf32, #tpu.memory_space<vmem>>, %arg3: memref<8x256xf32, #tpu.memory_space<vmem>>, %arg4: memref<8x256xf32, #tpu.memory_space<vmem>>, %arg5: memref<8x256xf32, #tpu.memory_space<vmem>>, %arg6: memref<8x1xf32, #tpu.memory_space<vmem>>, %arg7: memref<8x1xf32, #tpu.memory_space<vmem>>, %arg8: memref<8x1xf32, #tpu.memory_space<vmem>>, %arg9: memref<8x1xf32, #tpu.memory_space<vmem>>, %arg10: memref<8x1xf32, #tpu.memory_space<vmem>>) attributes {dimension_semantics = [#tpu.dimension_semantics<parallel>, #tpu.dimension_semantics<arbitrary>], iteration_bounds = array<i64: 1, 1>, scalar_prefetch = 0 : i64, scratch_operands = 4 : i64, tpu.core_type = #tpu.core_type<tc>, window_params = [{transform_indices = @transform_0, window_bounds = array<i64: 8, 256>}, {transform_indices = @transform_1, window_bounds = array<i64: 8, 256>}, {transform_indices = @transform_2, window_bounds = array<i64: 8, 256>}, {transform_indices = @transform_3, window_bounds = array<i64: 8, 256>}, {transform_indices = @transform_4, window_bounds = array<i64: 8, 1>}]} {
    %c0_i32 = arith.constant 0 : i32
    %0 = arith.cmpi eq, %arg1, %c0_i32 : i32
    %1 = arith.extui %0 : i1 to i32
    %c0_i32_0 = arith.constant 0 : i32
    %2 = arith.cmpi ne, %1, %c0_i32_0 : i32
    scf.if %2 {
      %cst_29 = arith.constant 0.000000e+00 : f32
      %36 = vector.broadcast %cst_29 : f32 to vector<8x1xf32>
      %c0_30 = arith.constant 0 : index
      %c0_31 = arith.constant 0 : index
      %37 = vector.load %arg7[%c0_30, %c0_31] : memref<8x1xf32, #tpu.memory_space<vmem>>, vector<8x1xf32>
      tpu.vector_store %arg7[%c0_30, %c0_31], %36 {strides = array<i32>} : memref<8x1xf32, #tpu.memory_space<vmem>>, vector<8x1xf32>,
      %cst_32 = arith.constant 0.000000e+00 : f32
      %38 = vector.broadcast %cst_32 : f32 to vector<8x1xf32>
      %c0_33 = arith.constant 0 : index
      %c0_34 = arith.constant 0 : index
      %39 = vector.load %arg8[%c0_33, %c0_34] : memref<8x1xf32, #tpu.memory_space<vmem>>, vector<8x1xf32>
      tpu.vector_store %arg8[%c0_33, %c0_34], %38 {strides = array<i32>} : memref<8x1xf32, #tpu.memory_space<vmem>>, vector<8x1xf32>,
      %cst_35 = arith.constant 0.000000e+00 : f32
      %40 = vector.broadcast %cst_35 : f32 to vector<8x1xf32>
      %c0_36 = arith.constant 0 : index
      %c0_37 = arith.constant 0 : index
      %41 = vector.load %arg9[%c0_36, %c0_37] : memref<8x1xf32, #tpu.memory_space<vmem>>, vector<8x1xf32>
      tpu.vector_store %arg9[%c0_36, %c0_37], %40 {strides = array<i32>} : memref<8x1xf32, #tpu.memory_space<vmem>>, vector<8x1xf32>,
      %cst_38 = arith.constant 0.000000e+00 : f32
      %42 = vector.broadcast %cst_38 : f32 to vector<8x1xf32>
      %c0_39 = arith.constant 0 : index
      %c0_40 = arith.constant 0 : index
      %43 = vector.load %arg10[%c0_39, %c0_40] : memref<8x1xf32, #tpu.memory_space<vmem>>, vector<8x1xf32>
      tpu.vector_store %arg10[%c0_39, %c0_40], %42 {strides = array<i32>} : memref<8x1xf32, #tpu.memory_space<vmem>>, vector<8x1xf32>,
    } else {
    }
    %c0 = arith.constant 0 : index
    %c0_1 = arith.constant 0 : index
    %3 = vector.load %arg2[%c0, %c0_1] : memref<8x256xf32, #tpu.memory_space<vmem>>, vector<8x256xf32>
    %c0_2 = arith.constant 0 : index
    %c0_3 = arith.constant 0 : index
    %4 = vector.load %arg3[%c0_2, %c0_3] : memref<8x256xf32, #tpu.memory_space<vmem>>, vector<8x256xf32>
    %c0_4 = arith.constant 0 : index
    %c0_5 = arith.constant 0 : index
    %5 = vector.load %arg4[%c0_4, %c0_5] : memref<8x256xf32, #tpu.memory_space<vmem>>, vector<8x256xf32>
    %c0_6 = arith.constant 0 : index
    %c0_7 = arith.constant 0 : index
    %6 = vector.load %arg5[%c0_6, %c0_7] : memref<8x256xf32, #tpu.memory_space<vmem>>, vector<8x256xf32>
    %7 = arith.subf %3, %5 : vector<8x256xf32>
    %8 = math.absf %7 : vector<8x256xf32>
    %9 = arith.subf %4, %6 : vector<8x256xf32>
    %10 = math.absf %9 : vector<8x256xf32>
    %11 = math.absf %5 : vector<8x256xf32>
    %12 = math.absf %6 : vector<8x256xf32>
    %c0_8 = arith.constant 0 : index
    %c0_9 = arith.constant 0 : index
    %13 = vector.load %arg7[%c0_8, %c0_9] : memref<8x1xf32, #tpu.memory_space<vmem>>, vector<8x1xf32>
    %cst = arith.constant dense<0.000000e+00> : vector<8xf32>
    %14 = vector.multi_reduction <add>, %8, %cst [1] : vector<8x256xf32> to vector<8xf32>
    %15 = vector.shape_cast %14 : vector<8xf32> to vector<8x1xf32>
    %16 = arith.addf %13, %15 : vector<8x1xf32>
    %c0_10 = arith.constant 0 : index
    %c0_11 = arith.constant 0 : index
    %17 = vector.load %arg7[%c0_10, %c0_11] : memref<8x1xf32, #tpu.memory_space<vmem>>, vector<8x1xf32>
    tpu.vector_store %arg7[%c0_10, %c0_11], %16 {strides = array<i32>} : memref<8x1xf32, #tpu.memory_space<vmem>>, vector<8x1xf32>,
    %c0_12 = arith.constant 0 : index
    %c0_13 = arith.constant 0 : index
    %18 = vector.load %arg8[%c0_12, %c0_13] : memref<8x1xf32, #tpu.memory_space<vmem>>, vector<8x1xf32>
    %cst_14 = arith.constant dense<0.000000e+00> : vector<8xf32>
    %19 = vector.multi_reduction <add>, %10, %cst_14 [1] : vector<8x256xf32> to vector<8xf32>
    %20 = vector.shape_cast %19 : vector<8xf32> to vector<8x1xf32>
    %21 = arith.addf %18, %20 : vector<8x1xf32>
    %c0_15 = arith.constant 0 : index
    %c0_16 = arith.constant 0 : index
    %22 = vector.load %arg8[%c0_15, %c0_16] : memref<8x1xf32, #tpu.memory_space<vmem>>, vector<8x1xf32>
    tpu.vector_store %arg8[%c0_15, %c0_16], %21 {strides = array<i32>} : memref<8x1xf32, #tpu.memory_space<vmem>>, vector<8x1xf32>,
    %c0_17 = arith.constant 0 : index
    %c0_18 = arith.constant 0 : index
    %23 = vector.load %arg9[%c0_17, %c0_18] : memref<8x1xf32, #tpu.memory_space<vmem>>, vector<8x1xf32>
    %cst_19 = arith.constant dense<0.000000e+00> : vector<8xf32>
    %24 = vector.multi_reduction <add>, %11, %cst_19 [1] : vector<8x256xf32> to vector<8xf32>
    %25 = vector.shape_cast %24 : vector<8xf32> to vector<8x1xf32>
    %26 = arith.addf %23, %25 : vector<8x1xf32>
    %c0_20 = arith.constant 0 : index
    %c0_21 = arith.constant 0 : index
    %27 = vector.load %arg9[%c0_20, %c0_21] : memref<8x1xf32, #tpu.memory_space<vmem>>, vector<8x1xf32>
    tpu.vector_store %arg9[%c0_20, %c0_21], %26 {strides = array<i32>} : memref<8x1xf32, #tpu.memory_space<vmem>>, vector<8x1xf32>,
    %c0_22 = arith.constant 0 : index
    %c0_23 = arith.constant 0 : index
    %28 = vector.load %arg10[%c0_22, %c0_23] : memref<8x1xf32, #tpu.memory_space<vmem>>, vector<8x1xf32>
    %cst_24 = arith.constant dense<0.000000e+00> : vector<8xf32>
    %29 = vector.multi_reduction <add>, %12, %cst_24 [1] : vector<8x256xf32> to vector<8xf32>
    %30 = vector.shape_cast %29 : vector<8xf32> to vector<8x1xf32>
    %31 = arith.addf %28, %30 : vector<8x1xf32>
    %c0_25 = arith.constant 0 : index
    %c0_26 = arith.constant 0 : index
    %32 = vector.load %arg10[%c0_25, %c0_26] : memref<8x1xf32, #tpu.memory_space<vmem>>, vector<8x1xf32>
    tpu.vector_store %arg10[%c0_25, %c0_26], %31 {strides = array<i32>} : memref<8x1xf32, #tpu.memory_space<vmem>>, vector<8x1xf32>,
    %c0_i32_27 = arith.constant 0 : i32
    %33 = arith.cmpi eq, %arg1, %c0_i32_27 : i32
    %34 = arith.extui %33 : i1 to i32
    %c0_i32_28 = arith.constant 0 : i32
    %35 = arith.cmpi ne, %34, %c0_i32_28 : i32
    scf.if %35 {
      %c0_29 = arith.constant 0 : index
      %c0_30 = arith.constant 0 : index
      %36 = vector.load %arg7[%c0_29, %c0_30] : memref<8x1xf32, #tpu.memory_space<vmem>>, vector<8x1xf32>
      %cst_31 = arith.constant 9.99999993E-9 : f32
      %37 = vector.broadcast %cst_31 : f32 to vector<8x1xf32>
      %38 = arith.addf %36, %37 : vector<8x1xf32>
      %39 = math.log %38 : vector<8x1xf32>
      %cst_32 = arith.constant 0.434294492 : f32
      %40 = vector.broadcast %cst_32 : f32 to vector<8x1xf32>
      %41 = arith.mulf %39, %40 : vector<8x1xf32>
      %c0_33 = arith.constant 0 : index
      %c0_34 = arith.constant 0 : index
      %42 = vector.load %arg9[%c0_33, %c0_34] : memref<8x1xf32, #tpu.memory_space<vmem>>, vector<8x1xf32>
      %cst_35 = arith.constant 9.99999993E-9 : f32
      %43 = vector.broadcast %cst_35 : f32 to vector<8x1xf32>
      %44 = arith.addf %42, %43 : vector<8x1xf32>
      %45 = math.log %44 : vector<8x1xf32>
      %cst_36 = arith.constant 0.434294492 : f32
      %46 = vector.broadcast %cst_36 : f32 to vector<8x1xf32>
      %47 = arith.mulf %45, %46 : vector<8x1xf32>
      %48 = arith.subf %41, %47 : vector<8x1xf32>
      %cst_37 = arith.constant 1.000000e+01 : f32
      %49 = vector.broadcast %cst_37 : f32 to vector<8x1xf32>
      %50 = arith.mulf %49, %48 : vector<8x1xf32>
      %c0_38 = arith.constant 0 : index
      %c0_39 = arith.constant 0 : index
      %51 = vector.load %arg8[%c0_38, %c0_39] : memref<8x1xf32, #tpu.memory_space<vmem>>, vector<8x1xf32>
      %cst_40 = arith.constant 9.99999993E-9 : f32
      %52 = vector.broadcast %cst_40 : f32 to vector<8x1xf32>
      %53 = arith.addf %51, %52 : vector<8x1xf32>
      %54 = math.log %53 : vector<8x1xf32>
      %cst_41 = arith.constant 0.434294492 : f32
      %55 = vector.broadcast %cst_41 : f32 to vector<8x1xf32>
      %56 = arith.mulf %54, %55 : vector<8x1xf32>
      %c0_42 = arith.constant 0 : index
      %c0_43 = arith.constant 0 : index
      %57 = vector.load %arg10[%c0_42, %c0_43] : memref<8x1xf32, #tpu.memory_space<vmem>>, vector<8x1xf32>
      %cst_44 = arith.constant 9.99999993E-9 : f32
      %58 = vector.broadcast %cst_44 : f32 to vector<8x1xf32>
      %59 = arith.addf %57, %58 : vector<8x1xf32>
      %60 = math.log %59 : vector<8x1xf32>
      %cst_45 = arith.constant 0.434294492 : f32
      %61 = vector.broadcast %cst_45 : f32 to vector<8x1xf32>
      %62 = arith.mulf %60, %61 : vector<8x1xf32>
      %63 = arith.subf %56, %62 : vector<8x1xf32>
      %cst_46 = arith.constant 1.000000e+01 : f32
      %64 = vector.broadcast %cst_46 : f32 to vector<8x1xf32>
      %65 = arith.mulf %64, %63 : vector<8x1xf32>
      %66 = arith.addf %50, %65 : vector<8x1xf32>
      %c0_47 = arith.constant 0 : index
      %c0_48 = arith.constant 0 : index
      %67 = vector.load %arg6[%c0_47, %c0_48] : memref<8x1xf32, #tpu.memory_space<vmem>>, vector<8x1xf32>
      tpu.vector_store %arg6[%c0_47, %c0_48], %66 {strides = array<i32>} : memref<8x1xf32, #tpu.memory_space<vmem>>, vector<8x1xf32>,
    } else {
    }
    return
  }
  func.func @transform_0(%arg0: i32, %arg1: i32) -> (i32, i32) {
    %c0_i32 = arith.constant 0 : i32
    return %arg0, %arg1 : i32, i32
  }
  func.func @transform_1(%arg0: i32, %arg1: i32) -> (i32, i32) {
    %c0_i32 = arith.constant 0 : i32
    return %arg0, %arg1 : i32, i32
  }
  func.func @transform_2(%arg0: i32, %arg1: i32) -> (i32, i32) {
    %c0_i32 = arith.constant 0 : i32
    return %arg0, %arg1 : i32, i32
  }
  func.func @transform_3(%arg0: i32, %arg1: i32) -> (i32, i32) {
    %c0_i32 = arith.constant 0 : i32
    return %arg0, %arg1 : i32, i32
  }
  func.func @transform_4(%arg0: i32, %arg1: i32) -> (i32, i32) {
    %c0_i32 = arith.constant 0 : i32
    %c0_i32_0 = arith.constant 0 : i32
    return %arg0, %c0_i32 : i32, i32
  }
}

</mosaic_0001>

<llo_original>
// kernel: custom-call.1
$region0: #{custom-call.1}
  %s0 = inlined_call_operand.hbm [shape: c64[2,4,16,16], index: 0, kind: input, shape index: {}]
  %s1 = inlined_call_operand.vmem [shape: f32[2,4,16,16], index: 1, kind: output, shape index: {}]
  %s2 = scalar_lea.hbm %s0, 2048
  $region1: #{custom-call.1} parent=0
    #allocation0 [shape = 's32[1]{0}', space=sflag, size = 0x4, scoped, tag = 'scoped memory for custom-call.1']
    %3 = vsyncpa [#allocation0], 0
    %s4 = sshll.u32 %s1, 4
    %s5 = int_to_ptr.vmem [resolvable:$true] %s4
    %7 = dma.hbm_to_vmem [thread:$0]  %s2, 2048, %s5, [#allocation0]
    %8 = dma.done [#allocation0], 2048
    %9 = vsyncpa [#allocation0], 1

// kernel: custom-call
$region0: #{custom-call}
  %s0 = inlined_call_operand.hbm [shape: c64[2,4,16,16], index: 0, kind: input, shape index: {}]
  %s1 = inlined_call_operand.vmem [shape: f32[2,4,16,16], index: 1, kind: output, shape index: {}]
  $region1: #{custom-call} parent=0
    #allocation0 [shape = 's32[1]{0}', space=sflag, size = 0x4, scoped, tag = 'scoped memory for custom-call']
    %2 = vsyncpa [#allocation0], 0
    %s3 = sshll.u32 %s1, 4
    %s4 = int_to_ptr.vmem [resolvable:$true] %s3
    %6 = dma.hbm_to_vmem [thread:$0]  %s0, 2048, %s4, [#allocation0]
    %7 = dma.done [#allocation0], 2048
    %8 = vsyncpa [#allocation0], 1

// kernel: spectrogram_l1_snr.1
$region0: #{spectrogram_l1_snr.1}
  #allocation0 [shape = 'u32[]', space=smem, size = 0x4, offset = 0x4, fixed_abs, tag = 'smem constant byte address 0x4 - core index']
  #allocation1 [shape = 'u32[144,128]{1,0:T(1,128)}', space=vmem, size = 0x12000, scoped, tag = 'internal scratch']
  #allocation2 [shape = 'f32[8,1]{1,0:T(8,128)}', space=vmem, size = 0x1000, scoped, tag = 'scratch operand']
  #allocation3 [shape = 'f32[8,1]{1,0:T(8,128)}', space=vmem, size = 0x1000, scoped, tag = 'scratch operand']
  #allocation4 [shape = 'f32[8,1]{1,0:T(8,128)}', space=vmem, size = 0x1000, scoped, tag = 'scratch operand']
  #allocation5 [shape = 'f32[8,1]{1,0:T(8,128)}', space=vmem, size = 0x1000, scoped, tag = 'scratch operand']
  %s0 = inlined_call_operand.vmem [shape: f32[8,256], index: 0, kind: input, shape index: {}]
  %s1 = inlined_call_operand.vmem [shape: f32[8,256], index: 1, kind: input, shape index: {}]
  %s2 = inlined_call_operand.vmem [shape: f32[8,256], index: 2, kind: input, shape index: {}]
  %s3 = inlined_call_operand.vmem [shape: f32[8,256], index: 3, kind: input, shape index: {}]
  %s4 = inlined_call_operand.vmem [shape: f32[8,1], index: 4, kind: output, shape index: {}]
  %s5 = sld [smem:[#allocation0]]
  $region34: #{spectrogram_l1_snr.1} parent=0
    _
  %s7 = ssub.s32 1, %s5
  %s8 = scalar_select 0, %s7, %s5
  // Predicated region
  $region2: #{spectrogram_l1_snr.1} parent=0 // pred_check
    _
  $region3: #{spectrogram_l1_snr.1} parent=0 // pred_check_branch
    %10 = sbr.rel (0) target = $region5
  $region4: #{spectrogram_l1_snr.1} parent=0 // pred_region
    _
  $region5: #{spectrogram_l1_snr.1} parent=0 // pred_fallthru
    _
  // Predicated region
  $region6: #{spectrogram_l1_snr.1} parent=0 // pred_check
    _
  $region7: #{spectrogram_l1_snr.1} parent=0 // pred_check_branch
    %12 = sbr.rel (0) target = $region9
  $region8: #{spectrogram_l1_snr.1} parent=0 // pred_region
    _
  $region9: #{spectrogram_l1_snr.1} parent=0 // pred_fallthru
    _
  // Predicated region
  $region10: #{spectrogram_l1_snr.1} parent=0 // pred_check
    _
  $region11: #{spectrogram_l1_snr.1} parent=0 // pred_check_branch
    %14 = sbr.rel (0) target = $region13
  $region12: #{spectrogram_l1_snr.1} parent=0 // pred_region
    _
  $region13: #{spectrogram_l1_snr.1} parent=0 // pred_fallthru
    _
  // Predicated region
  $region14: #{spectrogram_l1_snr.1} parent=0 // pred_check
    _
  $region15: #{spectrogram_l1_snr.1} parent=0 // pred_check_branch
    %16 = sbr.rel (0) target = $region17
  $region16: #{spectrogram_l1_snr.1} parent=0 // pred_region
    _
  $region17: #{spectrogram_l1_snr.1} parent=0 // pred_fallthru
    _
  %p17 = scmp.eq.s32.totalorder 0, 0
  // Predicated region
  $region18: #{spectrogram_l1_snr.1} parent=0 // pred_check
    %p18 = pneg %p17
  $region19: #{spectrogram_l1_snr.1} parent=0 // pred_check_branch
    %20 = sbr.rel (%p18) target = $region21
  $region20: #{spectrogram_l1_snr.1} parent=0 // pred_region
    %vm21 = vcmask 7168
    %22 = vst.msk [vmem:[#allocation2] sm:$0xff] %vm21, 0.0
    %23 = vst.msk [vmem:[#allocation3] sm:$0xff] %vm21, 0.0
    %24 = vst.msk [vmem:[#allocation4] sm:$0xff] %vm21, 0.0
    %25 = vst.msk [vmem:[#allocation5] sm:$0xff] %vm21, 0.0
  $region21: #{spectrogram_l1_snr.1} parent=0 // pred_fallthru
    _
  %v26 = vld [vmem:[%s0] sm:$0xff]
  %v27 = vld [vmem:[%s0 + $0x8] sm:$0xff]
  %v28 = vld [vmem:[%s1] sm:$0xff]
  %v29 = vld [vmem:[%s1 + $0x8] sm:$0xff]
  %v30 = vld [vmem:[%s2] sm:$0xff]
  %v31 = vld [vmem:[%s2 + $0x8] sm:$0xff]
  %v32 = vld [vmem:[%s3] sm:$0xff]
  %v33 = vld [vmem:[%s3 + $0x8] sm:$0xff]
  %v34 = vsub.f32 %v26, %v30
  %v35 = vsub.f32 %v27, %v31
  %v36 = vand.u32 2147483647, %v34
  %v37 = vand.u32 2147483647, %v35
  %v38 = vsub.f32 %v28, %v32
  %v39 = vsub.f32 %v29, %v33
  %v40 = vand.u32 2147483647, %v38
  %v41 = vand.u32 2147483647, %v39
  %v42 = vand.u32 2147483647, %v30
  %v43 = vand.u32 2147483647, %v31
  %v44 = vand.u32 2147483647, %v32
  %v45 = vand.u32 2147483647, %v33
  %v46 = vld [vmem:[#allocation2] sm:$0xff]
  %v47 = vadd.f32 %v36, %v37
  %48 = vadd.xlane.f32.xlu0 %v47
  %v49 = vpop.xlane.xlu0 %48
  %v50 = vadd.f32 %v46, %v49
  %vm51 = vcmask 7168
  %52 = vst.msk [vmem:[#allocation2] sm:$0xff] %vm51, %v50
  %v53 = vld [vmem:[#allocation3] sm:$0xff]
  %v54 = vadd.f32 %v40, %v41
  %55 = vadd.xlane.f32.xlu0 %v54
  %v56 = vpop.xlane.xlu0 %55
  %v57 = vadd.f32 %v53, %v56
  %58 = vst.msk [vmem:[#allocation3] sm:$0xff] %vm51, %v57
  %v59 = vld [vmem:[#allocation4] sm:$0xff]
  %v60 = vadd.f32 %v42, %v43
  %61 = vadd.xlane.f32.xlu0 %v60
  %v62 = vpop.xlane.xlu0 %61
  %v63 = vadd.f32 %v59, %v62
  %64 = vst.msk [vmem:[#allocation4] sm:$0xff] %vm51, %v63
  %v65 = vld [vmem:[#allocation5] sm:$0xff]
  %v66 = vadd.f32 %v44, %v45
  %67 = vadd.xlane.f32.xlu0 %v66
  %v68 = vpop.xlane.xlu0 %67
  %v69 = vadd.f32 %v65, %v68
  %70 = vst.msk [vmem:[#allocation5] sm:$0xff] %vm51, %v69
  // Predicated region
  $region22: #{spectrogram_l1_snr.1} parent=0 // pred_check
    %p71 = pneg %p17
  $region23: #{spectrogram_l1_snr.1} parent=0 // pred_check_branch
    %73 = sbr.rel (%p71) target = $region25
  $region24: #{spectrogram_l1_snr.1} parent=0 // pred_region
    %v74 = vld [vmem:[#allocation2] sm:$0xff]
    %v75 = vadd.f32 %v74, 1e-08
    %v76 = vlog2.pop %v75
    %v77 = vmul.f32 %v76, 0.6931472
    %v78 = vmul.f32 %v77, 0.4342945
    %v79 = vld [vmem:[#allocation4] sm:$0xff]
    %v80 = vadd.f32 %v79, 1e-08
    %v81 = vlog2.pop %v80
    %v82 = vmul.f32 %v81, 0.6931472
    %v83 = vmul.f32 %v82, 0.4342945
    %v84 = vsub.f32 %v78, %v83
    %v85 = vmul.f32 %v84, 10.0
    %v86 = vld [vmem:[#allocation3] sm:$0xff]
    %v87 = vadd.f32 %v86, 1e-08
    %v88 = vlog2.pop %v87
    %v89 = vmul.f32 %v88, 0.6931472
    %v90 = vmul.f32 %v89, 0.4342945
    %v91 = vld [vmem:[#allocation5] sm:$0xff]
    %v92 = vadd.f32 %v91, 1e-08
    %v93 = vlog2.pop %v92
    %v94 = vmul.f32 %v93, 0.6931472
    %v95 = vmul.f32 %v94, 0.4342945
    %v96 = vsub.f32 %v90, %v95
    %v97 = vmul.f32 %v96, 10.0
    %v98 = vadd.f32 %v85, %v97
    %99 = vst.msk [vmem:[%s4] sm:$0xff] %vm51, %v98
  $region25: #{spectrogram_l1_snr.1} parent=0 // pred_fallthru
    _
  // Predicated region
  $region26: #{spectrogram_l1_snr.1} parent=0 // pred_check
    _
  $region27: #{spectrogram_l1_snr.1} parent=0 // pred_check_branch
    %101 = sbr.rel (0) target = $region29
  $region28: #{spectrogram_l1_snr.1} parent=0 // pred_region
    _
  $region29: #{spectrogram_l1_snr.1} parent=0 // pred_fallthru
    _
  // Predicated region
  $region30: #{spectrogram_l1_snr.1} parent=0 // pred_check
    _
  $region31: #{spectrogram_l1_snr.1} parent=0 // pred_check_branch
    %103 = sbr.rel (0) target = $region33
  $region32: #{spectrogram_l1_snr.1} parent=0 // pred_region
    _
  $region33: #{spectrogram_l1_snr.1} parent=0 // pred_fallthru
    _

</llo_original>
